<compile_context>
chip_gen: v7x
topology: tpu7x:2x2x1
jax: 0.10.0
libtpu: 0.0.40
codegen_flags: <defaults>
</compile_context>

<pallas_src>
import numpy as np
import jax
import jax.numpy as jnp
from jax.experimental import pallas as pl
from jax.experimental.pallas import tpu as pltpu


# ----------------------------- kernel -----------------------------------------


def _spectral_conv1d_kernel(x_ref, w_ref, bias_ref, o_ref):
    # x_ref:    (TB, C_in*W)   input batch block (bf16/f32)
    # w_ref:    (C_in*W, P)    folded rfft x spectral-weights x irfft matrix
    # bias_ref: (1, P)         bias broadcast over (o, t); zero in padded lanes
    # o_ref:    (TB, P)        lane-dense output slab
    acc = jnp.dot(x_ref[...], w_ref[...], preferred_element_type=jnp.float32)
    o_ref[...] = (acc + bias_ref[...]).astype(o_ref.dtype)


# ----------------------------- helpers -----------------------------------------


def _round_up(x, m):
    return ((x + m - 1) // m) * m


def _vmem_capacity_bytes():
    try:
        cap = int(pltpu.get_tpu_info().vmem_capacity_bytes)
        if cap > 0:
            return cap
    except Exception:
        pass
    return 64 * 1024 * 1024  # conservative: v7x has 64 MiB per TensorCore


def _const_spec(shape):
    """BlockSpec for a grid-invariant operand; single-buffered when supported."""
    index_map = lambda *_: tuple(0 for _ in shape)
    try:
        return pl.BlockSpec(shape, index_map, pipeline_mode=pl.Buffered(1))
    except TypeError:
        return pl.BlockSpec(shape, index_map)


# ----------------------------- host-side weight fold ---------------------------


def fold_spectral_conv1d_weights(w_real, w_imag, bias, width, modes,
                                 mat_dtype=jnp.bfloat16):
    """Fold truncated-rfft x complex-spectral-weights x truncated-irfft into one real
    matrix B_fold: (C_in*W, P), plus a lane-dense bias row (1, P).
    Compute this ONCE per weight set and reuse it across forward calls."""
    c_in, c_out, m = w_real.shape
    assert m == modes
    n_freq = width // 2 + 1
    assert modes <= n_freq

    # Pad the output (o, t) dimension to whole lane tiles; use 256 alignment when the
    # matrix has many MXU N-tiles (v6e/v7x 256-wide MXU), 128 otherwise.
    lane_align = 256 if c_out * width >= 1024 else 128
    p_out = _round_up(c_out * width, lane_align)

    # DFT matrices on the host (numpy, int64 modular phases -> no int32 overflow).
    w_idx = np.arange(width, dtype=np.int64)
    m_idx = np.arange(modes, dtype=np.int64)

    # truncated rfft, norm='forward' (1/W): S = x @ F, F = [cos | -sin]/W : (W, 2m)
    ph_f = (2.0 * np.pi / width) * ((w_idx[:, None] * m_idx[None, :]) % width)
    f_mat = (np.concatenate([np.cos(ph_f), -np.sin(ph_f)], axis=1) / width
             ).astype(np.float32)

    # truncated irfft, norm='forward' (no scaling), Hermitian coefficients.
    coef = np.where(m_idx == 0, 1.0,
                    np.where((width % 2 == 0) & (m_idx == width // 2), 1.0, 2.0)
                    ).astype(np.float32)
    ph_i = (2.0 * np.pi / width) * ((m_idx[:, None] * w_idx[None, :]) % width)
    cos_i = jnp.asarray(coef[:, None] * np.cos(ph_i).astype(np.float32))  # (m, W)
    sin_i = jnp.asarray(coef[:, None] * np.sin(ph_i).astype(np.float32))  # (m, W)

    wr = jnp.asarray(w_real, jnp.float32)   # (C_in, C_out, m)
    wi = jnp.asarray(w_imag, jnp.float32)

    # A[i]: (2m, C_out*W).  Rows [0:m] multiply Re(X), rows [m:2m] multiply Im(X):
    #   y = Re(Y) cos_i - Im(Y) sin_i ;  Re(Y)=Xr*Wr - Xi*Wi ;  Im(Y)=Xr*Wi + Xi*Wr
    a_re = (jnp.einsum("iom,mt->imot", wr, cos_i)
            - jnp.einsum("iom,mt->imot", wi, sin_i))          # multiplies Re(X)
    a_im = (-jnp.einsum("iom,mt->imot", wi, cos_i)
            - jnp.einsum("iom,mt->imot", wr, sin_i))          # multiplies Im(X)
    a_fold = jnp.concatenate([a_re, a_im], axis=1)            # (C_in, 2m, C_out, W)
    a_fold = a_fold.reshape(c_in, 2 * modes, c_out * width)

    # Fold the forward DFT in as well: B[i] = F @ A[i]  ->  (C_in, W, C_out*W)
    b_fold = jnp.einsum("wk,ikp->iwp", jnp.asarray(f_mat), a_fold)
    b_fold = b_fold.reshape(c_in * width, c_out * width)
    b_fold = jnp.pad(b_fold, ((0, 0), (0, p_out - c_out * width))).astype(mat_dtype)

    no_bias = bias is None or (isinstance(bias, (int, float)) and bias == 0)
    if no_bias:
        bias_row = jnp.zeros((1, p_out), jnp.float32)
    else:
        bias_row = jnp.broadcast_to(
            jnp.reshape(jnp.asarray(bias, jnp.float32), (c_out, 1)),
            (c_out, width)).reshape(1, c_out * width)
        bias_row = jnp.pad(bias_row, ((0, 0), (0, p_out - c_out * width)))

    return b_fold, bias_row


# ----------------------------- pallas_call wrapper ------------------------------


def apply_spectral_conv1d(x, b_fold, bias_row, c_out):
    """x: (B, C_in, W); b_fold: (C_in*W, P); bias_row: (1, P).  Returns (B, C_out, W)."""
    b, c_in, width = x.shape
    kdim, p_out = b_fold.shape
    assert kdim == c_in * width

    mat_dtype = b_fold.dtype
    itemsize = jnp.dtype(mat_dtype).itemsize
    out_itemsize = jnp.dtype(x.dtype).itemsize

    # Lane-denser 2-D input slab; the kernel never slices channels.
    x2d = x.reshape(b, c_in * width).astype(mat_dtype)

    # ---- VMEM-budget-driven batch block -------------------------------------
    cap = _vmem_capacity_bytes()
    budget = int(0.75 * cap)
    const_bytes = (_round_up(kdim, 8) * p_out * itemsize   # folded weights (1 buffer)
                   + 8 * p_out * 4)                        # bias row
    assert const_bytes <= budget, (
        "folded spectral matrix does not fit VMEM; use the two-stage path "
        "(see TODO(synk) in the header)")
    row_bytes = (2 * _round_up(kdim, 128) * itemsize       # double-buffered x block
                 + 2 * p_out * out_itemsize)                # double-buffered out block
    avail = max(budget - const_bytes, 8 * row_bytes)
    tb = max(8, min((avail // row_bytes) // 8 * 8, 1024))

    b_pad8 = _round_up(b, 8)
    if b_pad8 >= 16:
        # keep >= 2 grid steps so both v7x TensorCores get work on the parallel axis
        tb = min(tb, max(8, (b_pad8 // 2) // 8 * 8))
    tb = min(tb, b_pad8)

    b_pad = _round_up(b, tb)
    if b_pad != b:
        x2d = jnp.pad(x2d, ((0, b_pad - b), (0, 0)))
    grid = (b_pad // tb,)

    # ---- specs ---------------------------------------------------------------
    x_spec = pl.BlockSpec((tb, kdim), lambda j: (j, 0))
    w_spec = _const_spec((kdim, p_out))
    bias_spec = _const_spec((1, p_out))
    out_specs = pl.BlockSpec((tb, p_out), lambda j: (j, 0))

    # ---- compiler params / cost ----------------------------------------------
    need = (2 * tb * _round_up(kdim, 128) * itemsize
            + 2 * tb * p_out * out_itemsize
            + 2 * _round_up(kdim, 8) * p_out * itemsize   # headroom if consts double-buffer
            + 2 * 8 * p_out * 4)
    vmem_limit = int(min(max(2 * need, 16 * 1024 * 1024), int(0.9 * cap)))

    flops = 2 * b_pad * kdim * p_out
    bytes_accessed = (b_pad * kdim * itemsize            # x, streamed once
                      + b_pad * p_out * out_itemsize     # out, written once
                      + kdim * p_out * itemsize          # folded weights, fetched once
                      + p_out * 4)                       # bias, fetched once
    cost = pl.CostEstimate(flops=flops, transcendentals=0,
                           bytes_accessed=bytes_accessed)

    def _call(in_specs):
        return pl.pallas_call(
            _spectral_conv1d_kernel,
            out_shape=jax.ShapeDtypeStruct((b_pad, p_out), x.dtype),
            grid_spec=pltpu.PrefetchScalarGridSpec(
                num_scalar_prefetch=0,
                grid=grid,
                in_specs=in_specs,
                out_specs=out_specs,
            ),
            compiler_params=pltpu.CompilerParams(
                dimension_semantics=("parallel",),
                vmem_limit_bytes=vmem_limit,
            ),
            cost_estimate=cost,
        )(x2d, b_fold, bias_row)

    try:
        out2d = _call([x_spec, w_spec, bias_spec])
    except Exception:
        # Fallback: default (double-buffered) specs for the constant operands.
        out2d = _call([
            x_spec,
            pl.BlockSpec((kdim, p_out), lambda j: (0, 0)),
            pl.BlockSpec((1, p_out), lambda j: (0, 0)),
        ])

    return out2d[:b, :c_out * width].reshape(b, c_out, width)


def factorized_spectral_conv1d(x, w_real, w_imag, bias, modes,
                               fft_norm="forward", use_bf16=True):
    """Full forward: x (B, C_in, W); w_* (C_in, C_out, modes); bias (1, C_out, 1) or None."""
    assert fft_norm == "forward"
    mat_dtype = jnp.bfloat16 if use_bf16 else jnp.float32
    b_fold, bias_row = fold_spectral_conv1d_weights(
        w_real, w_imag, bias, x.shape[-1], modes, mat_dtype=mat_dtype)
    return apply_spectral_conv1d(x, b_fold, bias_row, w_real.shape[1])


# ----------------------------- self-test ----------------------------------------


if __name__ == "__main__":
    B, C_IN, C_OUT, WIDTH, MODES, N_LAYERS = 16, 4, 4, 16, 5, 1
    scale = 1.0 / (C_IN * C_OUT)

    key = jax.random.PRNGKey(0)
    kx, kwr, kwi, kb = jax.random.split(key, 4)
    x = jax.random.normal(kx, (B, C_IN, WIDTH), dtype=jnp.float32)

    # Dense complex weight equivalent to the tltorch-factorized parameter.
    w_real = scale * jax.random.normal(kwr, (N_LAYERS, C_IN, C_OUT, MODES), dtype=jnp.float32)
    w_imag = scale * jax.random.normal(kwi, (N_LAYERS, C_IN, C_OUT, MODES), dtype=jnp.float32)
    bias = scale * jax.random.normal(kb, (1, C_OUT, 1), dtype=jnp.float32)

    out_f32 = factorized_spectral_conv1d(x, w_real[0], w_imag[0], bias, MODES, use_bf16=False)
    out_bf16 = factorized_spectral_conv1d(x, w_real[0], w_imag[0], bias, MODES, use_bf16=True)
    out_f32, out_bf16 = jax.block_until_ready((out_f32, out_bf16))

    # Pure-JAX reference reproducing the PyTorch forward exactly.
    xf = jnp.fft.rfft(x, norm="forward")
    w_c = (w_real[0] + 1j * w_imag[0]).astype(jnp.complex64)
    out_fft = jnp.zeros((B, C_OUT, WIDTH // 2 + 1), dtype=jnp.complex64)
    out_fft = out_fft.at[:, :, :MODES].set(
        jnp.einsum("bix,iox->box", xf[:, :, :MODES], w_c))
    ref = jnp.fft.irfft(out_fft, n=WIDTH, norm="forward").astype(x.dtype) + bias

    err32 = float(jnp.max(jnp.abs(out_f32 - ref)))
    err16 = float(jnp.max(jnp.abs(out_bf16 - ref)))
    assert err32 < 1e-3, f"f32 path max abs error too large: {err32}"
    assert err16 < 5e-2, f"bf16 path max abs error too large: {err16}"
    print("KERNEL_OK")
</pallas_src>

<mosaic_0001>
module attributes {stable_mosaic.version = 11 : i64} {
  func.func @_spectral_conv1d_kernel(%arg0: i32, %arg1: memref<8x64xf32, #tpu.memory_space<vmem>>, %arg2: memref<64x128xf32, #tpu.memory_space<vmem>>, %arg3: memref<1x128xf32, #tpu.memory_space<vmem>>, %arg4: memref<8x128xf32, #tpu.memory_space<vmem>>) attributes {dimension_semantics = [#tpu.dimension_semantics<parallel>], iteration_bounds = array<i64: 2>, scalar_prefetch = 0 : i64, scratch_operands = 0 : i64, tpu.core_type = #tpu.core_type<tc>, window_params = [{transform_indices = @transform_0, window_bounds = array<i64: 8, 64>}, {pipeline_mode = #tpu.pipeline_mode<synchronous>, transform_indices = @transform_1, window_bounds = array<i64: 64, 128>}, {pipeline_mode = #tpu.pipeline_mode<synchronous>, transform_indices = @transform_2, window_bounds = array<i64: 1, 128>}, {transform_indices = @transform_3, window_bounds = array<i64: 8, 128>}]} {
    %c0 = arith.constant 0 : index
    %c0_0 = arith.constant 0 : index
    %0 = vector.load %arg1[%c0, %c0_0] : memref<8x64xf32, #tpu.memory_space<vmem>>, vector<8x64xf32>
    %c0_1 = arith.constant 0 : index
    %c0_2 = arith.constant 0 : index
    %1 = vector.load %arg2[%c0_1, %c0_2] : memref<64x128xf32, #tpu.memory_space<vmem>>, vector<64x128xf32>
    %cst = arith.constant dense<0.000000e+00> : vector<8x128xf32>
    %2 = tpu.matmul %0, %1, %cst {dimension_numbers = #tpu.dot_dimension_numbers<[1], [0], [0], [1], [0, 0, 1, 1], [], []>} : vector<8x64xf32>, vector<64x128xf32>, vector<8x128xf32> -> vector<8x128xf32>
    %c0_3 = arith.constant 0 : index
    %c0_4 = arith.constant 0 : index
    %3 = vector.load %arg3[%c0_3, %c0_4] : memref<1x128xf32, #tpu.memory_space<vmem>>, vector<1x128xf32>
    %4 = vector.broadcast %3 : vector<1x128xf32> to vector<8x128xf32>
    %5 = arith.addf %2, %4 : vector<8x128xf32>
    %c0_5 = arith.constant 0 : index
    %c0_6 = arith.constant 0 : index
    %6 = vector.load %arg4[%c0_5, %c0_6] : memref<8x128xf32, #tpu.memory_space<vmem>>, vector<8x128xf32>
    tpu.vector_store %arg4[%c0_5, %c0_6], %5 {strides = array<i32>} : memref<8x128xf32, #tpu.memory_space<vmem>>, vector<8x128xf32>,
    return
  }
  func.func @transform_0(%arg0: i32) -> (i32, i32) {
    %c0_i32 = arith.constant 0 : i32
    %c0_i32_0 = arith.constant 0 : i32
    return %arg0, %c0_i32 : i32, i32
  }
  func.func @transform_1(%arg0: i32) -> (i32, i32) {
    %c0_i32 = arith.constant 0 : i32
    %c0_i32_0 = arith.constant 0 : i32
    %c0_i32_1 = arith.constant 0 : i32
    return %c0_i32, %c0_i32_0 : i32, i32
  }
  func.func @transform_2(%arg0: i32) -> (i32, i32) {
    %c0_i32 = arith.constant 0 : i32
    %c0_i32_0 = arith.constant 0 : i32
    %c0_i32_1 = arith.constant 0 : i32
    return %c0_i32, %c0_i32_0 : i32, i32
  }
  func.func @transform_3(%arg0: i32) -> (i32, i32) {
    %c0_i32 = arith.constant 0 : i32
    %c0_i32_0 = arith.constant 0 : i32
    return %arg0, %c0_i32 : i32, i32
  }
}

module attributes {stable_mosaic.version = 11 : i64} {
  func.func @_spectral_conv1d_kernel(%arg0: i32, %arg1: memref<8x64xf32, #tpu.memory_space<vmem>>, %arg2: memref<64x128xf32, #tpu.memory_space<vmem>>, %arg3: memref<1x128xf32, #tpu.memory_space<vmem>>, %arg4: memref<8x128xf32, #tpu.memory_space<vmem>>) attributes {dimension_semantics = [#tpu.dimension_semantics<parallel>], iteration_bounds = array<i64: 2>, scalar_prefetch = 0 : i64, scratch_operands = 0 : i64, tpu.core_type = #tpu.core_type<tc>, window_params = [{transform_indices = @transform_0, window_bounds = array<i64: 8, 64>}, {pipeline_mode = #tpu.pipeline_mode<synchronous>, transform_indices = @transform_1, window_bounds = array<i64: 64, 128>}, {pipeline_mode = #tpu.pipeline_mode<synchronous>, transform_indices = @transform_2, window_bounds = array<i64: 1, 128>}, {transform_indices = @transform_3, window_bounds = array<i64: 8, 128>}]} {
    %c0 = arith.constant 0 : index
    %c0_0 = arith.constant 0 : index
    %0 = vector.load %arg1[%c0, %c0_0] : memref<8x64xf32, #tpu.memory_space<vmem>>, vector<8x64xf32>
    %c0_1 = arith.constant 0 : index
    %c0_2 = arith.constant 0 : index
    %1 = vector.load %arg2[%c0_1, %c0_2] : memref<64x128xf32, #tpu.memory_space<vmem>>, vector<64x128xf32>
    %cst = arith.constant dense<0.000000e+00> : vector<8x128xf32>
    %2 = tpu.matmul %0, %1, %cst {dimension_numbers = #tpu.dot_dimension_numbers<[1], [0], [0], [1], [0, 0, 1, 1], [], []>} : vector<8x64xf32>, vector<64x128xf32>, vector<8x128xf32> -> vector<8x128xf32>
    %c0_3 = arith.constant 0 : index
    %c0_4 = arith.constant 0 : index
    %3 = vector.load %arg3[%c0_3, %c0_4] : memref<1x128xf32, #tpu.memory_space<vmem>>, vector<1x128xf32>
    %4 = vector.broadcast %3 : vector<1x128xf32> to vector<8x128xf32>
    %5 = arith.addf %2, %4 : vector<8x128xf32>
    %c0_5 = arith.constant 0 : index
    %c0_6 = arith.constant 0 : index
    %6 = vector.load %arg4[%c0_5, %c0_6] : memref<8x128xf32, #tpu.memory_space<vmem>>, vector<8x128xf32>
    tpu.vector_store %arg4[%c0_5, %c0_6], %5 {strides = array<i32>} : memref<8x128xf32, #tpu.memory_space<vmem>>, vector<8x128xf32>,
    return
  }
  func.func @transform_0(%arg0: i32) -> (i32, i32) {
    %c0_i32 = arith.constant 0 : i32
    %c0_i32_0 = arith.constant 0 : i32
    return %arg0, %c0_i32 : i32, i32
  }
  func.func @transform_1(%arg0: i32) -> (i32, i32) {
    %c0_i32 = arith.constant 0 : i32
    %c0_i32_0 = arith.constant 0 : i32
    %c0_i32_1 = arith.constant 0 : i32
    return %c0_i32, %c0_i32_0 : i32, i32
  }
  func.func @transform_2(%arg0: i32) -> (i32, i32) {
    %c0_i32 = arith.constant 0 : i32
    %c0_i32_0 = arith.constant 0 : i32
    %c0_i32_1 = arith.constant 0 : i32
    return %c0_i32, %c0_i32_0 : i32, i32
  }
  func.func @transform_3(%arg0: i32) -> (i32, i32) {
    %c0_i32 = arith.constant 0 : i32
    %c0_i32_0 = arith.constant 0 : i32
    return %arg0, %c0_i32 : i32, i32
  }
}

</mosaic_0001>

<llo_original>
// kernel: tpu_custom_call.1
$region0: #{tpu_custom_call.1}
  #allocation0 [shape = 'u32[]', space=smem, size = 0x4, offset = 0x4, fixed_abs, tag = 'smem constant byte address 0x4 - core index']
  #allocation1 [shape = 'u32[144,128]{1,0:T(1,128)}', space=vmem, size = 0x12000, scoped, tag = 'internal scratch']
  %s0 = inlined_call_operand.hbm [shape: f32[16,64], index: 0, kind: input, shape index: {}]
  %s1 = inlined_call_operand.hbm [shape: f32[64,128], index: 1, kind: input, shape index: {}]
  %s2 = inlined_call_operand.vmem [shape: f32[1,128], index: 2, kind: input, shape index: {}]
  %s3 = inlined_call_operand.hbm [shape: f32[16,128], index: 3, kind: output, shape index: {}]
  %s4 = sld [smem:[#allocation0]]
  $region53: #{tpu_custom_call.1} parent=0
    _
  %s6 = ssub.s32 1, %s4
  %s7 = scalar_select 0, %s6, %s4
  $region1: #{tpu_custom_call.1} parent=0
    #allocation2 [shape = 'u8[8192]{0}', space=vmem, size = 0x2000, scoped, tag = 'input window, operand 0']
    #allocation3 [shape = 's32[2]{0}', space=sflag, size = 0x8, scoped, tag = 'scoped memory for tpu_custom_call.1']
    #allocation4 [shape = 's32[2]{0}', space=sflag, size = 0x8, scoped, tag = 'scoped memory for tpu_custom_call.1']
    #allocation5 [shape = 'u8[32768]{0}', space=vmem, size = 0x8000, scoped, tag = 'input window, operand 1, single buffered']
    #allocation6 [shape = 's32[1]{0}', space=sflag, size = 0x4, scoped, tag = 'scoped memory for tpu_custom_call.1']
    #allocation7 [shape = 'u8[8192]{0}', space=vmem, size = 0x2000, scoped, tag = 'output window, operand 0']
    %8 = vsyncpa [#allocation3], 0
    %s9 = scalar_lea.sflag [#allocation3], 1
    %10 = vsyncpa %s9, 0
    %11 = vsyncpa [#allocation6], 0
    %12 = vsyncpa [#allocation4], 0
    %s13 = scalar_lea.sflag [#allocation4], 1
    %14 = vsyncpa %s13, 0
    loop: start=0, step=1, limit=4
    $region2: #{tpu_custom_call.1} parent=1 // loop_pre_header
      _
    $region3: #{tpu_custom_call.1} parent=1 // loop_header
      %s16 = sphi 0, %s20
      %p17 = scmp.ge.s32.totalorder %s16, 4
      %s26 = sphi 0, %s28
      %s29 = sphi 0, %s26
      %s30 = sphi 0, %s29
      %s46 = sphi 0, %s30
      %s50 = sphi 0, %s50
      %s52 = sphi 0, %s50
      %s53 = sphi 0, %s52
      %s67 = sphi 0, %s53
      %s71 = sphi 0, %s71
      %s73 = sphi 0, %s71
      %s74 = sphi 0, %s73
      %s88 = sphi 0, %s74
      %s94 = sphi 0, %s96
      %s97 = sphi 0, %s94
      %s98 = sphi 0, %s97
      %s114 = sphi 0, %s98
    $region4: #{tpu_custom_call.1} parent=1 // loop_header_branch
      %19 = sbr.rel (%p17) target = $region8
    $region5: #{tpu_custom_call.1} parent=1 // loop_body
      %s21 = ssub.s32 %s16, 1
      %s22 = ssub.s32 %s16, 2
      %s23 = sadd.s32 %s16, 1
      %s24 = ssub.s32 %s16, %s23
      %p25 = scmp.eq.s32.totalorder %s24, 0
      %s27 = sadd.s32 %s26, 1
      %s28 = scalar_select %p25, %s26, %s27
      %p31 = pneg %p25
      %p32 = scmp.eq.s32.totalorder %s16, 1
      %p33 = por %p31, %p32
      %p34 = scmp.ne.s32.totalorder %s26, %s29
      %p35 = scmp.eq.s32.totalorder %s16, 0
      %p36 = por %p34, %p35
      %p37 = scmp.ne.s32.totalorder %s26, %s29
      %p38 = scmp.eq.s32.totalorder %s21, 1
      %p39 = por %p37, %p38
      %p40 = scmp.ne.s32.totalorder %s29, %s30
      %p41 = scmp.eq.s32.totalorder %s21, 0
      %p42 = por %p40, %p41
      %p43 = scmp.ne.s32.totalorder %s29, %s30
      %p44 = scmp.eq.s32.totalorder %s22, 1
      %p45 = por %p43, %p44
      %p47 = scmp.ne.s32.totalorder %s30, %s46
      %p48 = scmp.eq.s32.totalorder %s22, 0
      %p49 = por %p47, %p48
      %s51 = sadd.s32 %s50, 1
      %p54 = scmp.eq.s32.totalorder %s16, 1
      %p55 = scmp.ne.s32.totalorder %s50, %s52
      %p56 = scmp.eq.s32.totalorder %s16, 0
      %p57 = por %p55, %p56
      %p58 = scmp.ne.s32.totalorder %s50, %s52
      %p59 = scmp.eq.s32.totalorder %s21, 1
      %p60 = por %p58, %p59
      %p61 = scmp.ne.s32.totalorder %s52, %s53
      %p62 = scmp.eq.s32.totalorder %s21, 0
      %p63 = por %p61, %p62
      %p64 = scmp.ne.s32.totalorder %s52, %s53
      %p65 = scmp.eq.s32.totalorder %s22, 1
      %p66 = por %p64, %p65
      %p68 = scmp.ne.s32.totalorder %s53, %s67
      %p69 = scmp.eq.s32.totalorder %s22, 0
      %p70 = por %p68, %p69
      %s72 = sadd.s32 %s71, 1
      %p75 = scmp.eq.s32.totalorder %s16, 1
      %p76 = scmp.ne.s32.totalorder %s71, %s73
      %p77 = scmp.eq.s32.totalorder %s16, 0
      %p78 = por %p76, %p77
      %p79 = scmp.ne.s32.totalorder %s71, %s73
      %p80 = scmp.eq.s32.totalorder %s21, 1
      %p81 = por %p79, %p80
      %p82 = scmp.ne.s32.totalorder %s73, %s74
      %p83 = scmp.eq.s32.totalorder %s21, 0
      %p84 = por %p82, %p83
      %p85 = scmp.ne.s32.totalorder %s73, %s74
      %p86 = scmp.eq.s32.totalorder %s22, 1
      %p87 = por %p85, %p86
      %p89 = scmp.ne.s32.totalorder %s74, %s88
      %p90 = scmp.eq.s32.totalorder %s22, 0
      %p91 = por %p89, %p90
      %s92 = ssub.s32 %s16, %s23
      %p93 = scmp.eq.s32.totalorder %s92, 0
      %s95 = sadd.s32 %s94, 1
      %s96 = scalar_select %p93, %s94, %s95
      %p99 = pneg %p93
      %p100 = scmp.eq.s32.totalorder %s16, 1
      %p101 = por %p99, %p100
      %p102 = scmp.ne.s32.totalorder %s94, %s97
      %p103 = scmp.eq.s32.totalorder %s16, 0
      %p104 = por %p102, %p103
      %p105 = scmp.ne.s32.totalorder %s94, %s97
      %p106 = scmp.eq.s32.totalorder %s21, 1
      %p107 = por %p105, %p106
      %p108 = scmp.ne.s32.totalorder %s97, %s98
      %p109 = scmp.eq.s32.totalorder %s21, 0
      %p110 = por %p108, %p109
      %p111 = scmp.ne.s32.totalorder %s97, %s98
      %p112 = scmp.eq.s32.totalorder %s22, 1
      %p113 = por %p111, %p112
      %p115 = scmp.ne.s32.totalorder %s98, %s114
      %p116 = scmp.eq.s32.totalorder %s22, 0
      %p117 = por %p115, %p116
      %p118 = scmp.le.s32.totalorder 1, %s16
      %p119 = scmp.lt.s32.totalorder %s16, 3
      %p120 = pnand %p118, %p119
      %p121 = pneg %p120
      // Predicated region
      $region9: #{tpu_custom_call.1} parent=5 // pred_check
        _
      $region10: #{tpu_custom_call.1} parent=5 // pred_check_branch
        %123 = sbr.rel (%p120) target = $region12
      $region11: #{tpu_custom_call.1} parent=5 // pred_region
        %s124 = ssub.s32 %s16, 1
        // Predicated region
        $region13: #{tpu_custom_call.1} parent=11 // pred_check
          %p125 = pneg %p63
        $region14: #{tpu_custom_call.1} parent=11 // pred_check_branch
          %127 = sbr.rel (%p125) target = $region16
        $region15: #{tpu_custom_call.1} parent=11 // pred_region
          %s129 = ssub.s32 1024, 1024
          %130 = vsyncadd [#allocation6], %s129
          %s131 = sshll.u32 [#allocation5], 4
          %s132 = int_to_ptr.vmem [resolvable:$true] %s131
          %137 = dma.hbm_to_vmem [thread:$0]  %s1, 1024, %s132, [#allocation6], 128, 128, 8
        $region16: #{tpu_custom_call.1} parent=11 // pred_fallthru
          _
        // Predicated region
        $region17: #{tpu_custom_call.1} parent=11 // pred_check
          %p138 = pneg %p84
        $region18: #{tpu_custom_call.1} parent=11 // pred_check_branch
          %140 = sbr.rel (%p138) target = $region20
        $region19: #{tpu_custom_call.1} parent=11 // pred_region
          _
        $region20: #{tpu_custom_call.1} parent=11 // pred_fallthru
          _
      $region12: #{tpu_custom_call.1} parent=5 // pred_fallthru
        _
      %p141 = scmp.lt.s32.totalorder %s16, 2
      // Predicated region
      $region21: #{tpu_custom_call.1} parent=5 // pred_check
        %p142 = pneg %p141
      $region22: #{tpu_custom_call.1} parent=5 // pred_check_branch
        %144 = sbr.rel (%p142) target = $region24
      $region23: #{tpu_custom_call.1} parent=5 // pred_region
        // Predicated region
        $region25: #{tpu_custom_call.1} parent=23 // pred_check
          %p145 = pneg %p36
        $region26: #{tpu_custom_call.1} parent=23 // pred_check_branch
          %147 = sbr.rel (%p145) target = $region28
        $region27: #{tpu_custom_call.1} parent=23 // pred_region
          %s148 = sand.u32 %s26, 1
          %s149 = scalar_lea.sflag [#allocation3], %s148
          %s150 = sand.u32 %s26, 1
          %s151 = smul.addr %s150, 8
          %s152 = scalar_lea.vmem [#allocation2], %s151
          %s154 = ssub.s32 128, 128
          %155 = vsyncadd %s149, %s154
          %s156 = smul.addr %s16, 128
          %s157 = scalar_lea.hbm %s0, %s156
          %s159 = sshll.u32 %s152, 4
          %s160 = int_to_ptr.vmem [resolvable:$true] %s159
          %162 = dma.hbm_to_vmem [thread:$0]  %s157, 128, %s160, %s149
        $region28: #{tpu_custom_call.1} parent=23 // pred_fallthru
          _
      $region24: #{tpu_custom_call.1} parent=5 // pred_fallthru
        _
      %p163 = scmp.le.s32.totalorder 1, %s16
      %p164 = scmp.lt.s32.totalorder %s16, 3
      %p165 = pnand %p163, %p164
      %p166 = pneg %p165
      // Predicated region
      $region29: #{tpu_custom_call.1} parent=5 // pred_check
        _
      $region30: #{tpu_custom_call.1} parent=5 // pred_check_branch
        %168 = sbr.rel (%p165) target = $region32
      $region31: #{tpu_custom_call.1} parent=5 // pred_region
        %s169 = ssub.s32 %s16, 1
        %s170 = sand.u32 %s29, 1
        %s171 = scalar_lea.sflag [#allocation3], %s170
        %s172 = sand.u32 %s29, 1
        %s173 = smul.addr %s172, 8
        %s174 = scalar_lea.vmem [#allocation2], %s173
        // Predicated region
        $region33: #{tpu_custom_call.1} parent=31 // pred_check
          %p175 = pneg %p42
        $region34: #{tpu_custom_call.1} parent=31 // pred_check_branch
          %177 = sbr.rel (%p175) target = $region36
        $region35: #{tpu_custom_call.1} parent=31 // pred_region
          %178 = dma.done %s171, 128
        $region36: #{tpu_custom_call.1} parent=31 // pred_fallthru
          _
        // Predicated region
        $region37: #{tpu_custom_call.1} parent=31 // pred_check
          %p179 = pneg %p63
        $region38: #{tpu_custom_call.1} parent=31 // pred_check_branch
          %181 = sbr.rel (%p179) target = $region40
        $region39: #{tpu_custom_call.1} parent=31 // pred_region
          %182 = dma.done [#allocation6], 1024
        $region40: #{tpu_custom_call.1} parent=31 // pred_fallthru
          _
        %s183 = sand.u32 %s29, 1
        %s184 = scalar_lea.sflag [#allocation3], %s183
        %s185 = sand.u32 %s29, 1
        %s186 = smul.addr %s185, 8
        %s187 = scalar_lea.vmem [#allocation2], %s186
        %p188 = pneg %p42
        %p189 = pneg %p39
        %p190 = pneg %p63
        %p191 = pneg %p60
        %p192 = pneg %p84
        %p193 = pneg %p81
        %p194 = pneg %p110
        %p195 = pneg %p107
        %s196 = sand.u32 %s97, 1
        %s197 = scalar_lea.sflag [#allocation4], %s196
        %s198 = sand.u32 %s97, 1
        %s199 = smul.addr %s198, 8
        %s200 = scalar_lea.vmem [#allocation7], %s199
        %v201 = vld [vmem:[%s174] sm:$0xff]
        %v202 = vld [vmem:[#allocation5] sm:$0xff]
        %v203 = vld [vmem:[#allocation5 + $0x8] sm:$0xff]
        %v204 = vld [vmem:[#allocation5 + $0x10] sm:$0xff]
        %v205 = vld [vmem:[#allocation5 + $0x18] sm:$0xff]
        %v206 = vld [vmem:[#allocation5 + $0x20] sm:$0xff]
        %v207 = vld [vmem:[#allocation5 + $0x28] sm:$0xff]
        %v208 = vld [vmem:[#allocation5 + $0x30] sm:$0xff]
        %v209 = vld [vmem:[#allocation5 + $0x38] sm:$0xff]
        %v210 = vld [vmem:[%s2] sm:$0x1]
        %v212 = vlaneseq
        %v213 = vshrl.u32 %v212, 7
        %v214 = vsub.s32 0, %v213
        %v215 = vrot.slane %v210, %v214
        %vm217 = vcmask 523264
        %v219 = vsel %vm217, %v201, 0
        %221 = vmatprep.subr.mxu0 0.0
        %222 = vmatpush1.msra.mxu0 %v202
        %223 = vmatprep.subr.mxu0 0.0
        %224 = vmatpush1.msra.mxu0 %v203
        %225 = vmatprep.subr.mxu0 0.0
        %226 = vmatpush1.msra.mxu0 %v204
        %227 = vmatprep.subr.mxu0 0.0
        %228 = vmatpush1.msra.mxu0 %v205
        %229 = vmatprep.subr.mxu0 0.0
        %230 = vmatpush1.msra.mxu0 %v206
        %231 = vmatprep.subr.mxu0 0.0
        %232 = vmatpush1.msra.mxu0 %v207
        %233 = vmatprep.subr.mxu0 0.0
        %234 = vmatpush1.msra.mxu0 %v208
        %235 = vmatprep.subr.mxu0 0.0
        %236 = vmatpush1.msra.mxu0 %v209
        %237 = vmatprep.subr.mxu0 0.0
        %238 = vmatpush1.msra.mxu0 0.0
        %239 = vmatprep.subr.mxu0 0.0
        %240 = vmatpush1.msra.mxu0 0.0
        %241 = vmatprep.subr.mxu0 0.0
        %242 = vmatpush1.msra.mxu0 0.0
        %243 = vmatprep.subr.mxu0 0.0
        %244 = vmatpush1.msra.mxu0 0.0
        %245 = vmatprep.subr.mxu0 0.0
        %246 = vmatpush1.msra.mxu0 0.0
        %247 = vmatprep.subr.mxu0 0.0
        %248 = vmatpush1.msra.mxu0 0.0
        %249 = vmatprep.subr.mxu0 0.0
        %250 = vmatpush1.msra.mxu0 0.0
        %251 = vmatprep.subr.mxu0 0.0
        %252 = vmatpush1.msra.mxu0 0.0
        %253 = vmatprep.subr.mxu0 0.0
        %254 = vmatpush1.msra.mxu0 0.0
        %255 = vmatprep.subr.mxu0 0.0
        %256 = vmatpush1.msra.mxu0 0.0
        %257 = vmatprep.subr.mxu0 0.0
        %258 = vmatpush1.msra.mxu0 0.0
        %259 = vmatprep.subr.mxu0 0.0
        %260 = vmatpush1.msra.mxu0 0.0
        %261 = vmatprep.subr.mxu0 0.0
        %262 = vmatpush1.msra.mxu0 0.0
        %263 = vmatprep.subr.mxu0 0.0
        %264 = vmatpush1.msra.mxu0 0.0
        %265 = vmatprep.subr.mxu0 0.0
        %266 = vmatpush1.msra.mxu0 0.0
        %267 = vmatprep.subr.mxu0 0.0
        %268 = vmatpush1.msra.mxu0 0.0
        %269 = vmatprep.subr.mxu0 0.0
        %270 = vmatpush1.msra.mxu0 0.0
        %271 = vmatprep.subr.mxu0 0.0
        %272 = vmatpush1.msra.mxu0 0.0
        %273 = vmatprep.subr.mxu0 0.0
        %274 = vmatpush1.msra.mxu0 0.0
        %275 = vmatprep.subr.mxu0 0.0
        %276 = vmatpush1.msra.mxu0 0.0
        %277 = vmatprep.subr.mxu0 0.0
        %278 = vmatpush1.msra.mxu0 0.0
        %279 = vmatprep.subr.mxu0 0.0
        %280 = vmatpush1.msra.mxu0 0.0
        %281 = vmatprep.subr.mxu0 0.0
        %282 = vmatpush1.msra.mxu0 0.0
        %283 = vmatprep.subr.mxu0 0.0
        %284 = vmatpush1.msra.mxu0 0.0
        %285 = vmatprep.mubr.f32.mxu0 0.0
        %286 = vmatmul.mubr.f32.gmra.mrb[0].mxu0 %v219
        %v287 = vpop.f32.mrb[0].mxu0
        %v288 = vadd.f32 %v215, %v287
        %v289 = vpop.f32.mrb[0].mxu0
        %290 = vdwg.mxu0
        %291 = vst [vmem:[%s200] sm:$0xff] %v288
        %s292 = sand.u32 %s97, 1
        %s293 = scalar_lea.sflag [#allocation4], %s292
        %s294 = sand.u32 %s97, 1
        %s295 = smul.addr %s294, 8
        %s296 = scalar_lea.vmem [#allocation7], %s295
        // Predicated region
        $region41: #{tpu_custom_call.1} parent=31 // pred_check
          %p297 = pneg %p107
        $region42: #{tpu_custom_call.1} parent=31 // pred_check_branch
          %299 = sbr.rel (%p297) target = $region44
        $region43: #{tpu_custom_call.1} parent=31 // pred_region
          %s301 = ssub.s32 128, 128
          %302 = vsyncadd %s293, %s301
          %s303 = smul.addr %s21, 128
          %s304 = scalar_lea.hbm %s3, %s303
          %s306 = sshll.u32 %s296, 4
          %s307 = int_to_ptr.vmem [resolvable:$true] %s306
          %309 = dma.vmem_to_hbm [thread:$0]  %s307, 128, %s304, %s293
        $region44: #{tpu_custom_call.1} parent=31 // pred_fallthru
          _
      $region32: #{tpu_custom_call.1} parent=5 // pred_fallthru
        _
      %p310 = scmp.le.s32.totalorder 2, %s16
      // Predicated region
      $region45: #{tpu_custom_call.1} parent=5 // pred_check
        %p311 = pneg %p310
      $region46: #{tpu_custom_call.1} parent=5 // pred_check_branch
        %313 = sbr.rel (%p311) target = $region48
      $region47: #{tpu_custom_call.1} parent=5 // pred_region
        %s314 = ssub.s32 %s16, 2
        // Predicated region
        $region49: #{tpu_custom_call.1} parent=47 // pred_check
          %p315 = pneg %p113
        $region50: #{tpu_custom_call.1} parent=47 // pred_check_branch
          %317 = sbr.rel (%p315) target = $region52
        $region51: #{tpu_custom_call.1} parent=47 // pred_region
          %s318 = sand.u32 %s98, 1
          %s319 = scalar_lea.sflag [#allocation4], %s318
          %s320 = sand.u32 %s98, 1
          %s321 = smul.addr %s320, 8
          %s322 = scalar_lea.vmem [#allocation7], %s321
          %323 = dma.done %s319, 128
        $region52: #{tpu_custom_call.1} parent=47 // pred_fallthru
          _
      $region48: #{tpu_custom_call.1} parent=5 // pred_fallthru
        _
    $region6: #{tpu_custom_call.1} parent=1 // loop_footer
      %s20 = sadd.s32 1, %s16
    $region7: #{tpu_custom_call.1} parent=1 // loop_footer_branch
      %15 = sbr.rel target = $region3
    $region8: #{tpu_custom_call.1} parent=1 // loop_exit
      _
    %324 = vsyncpa [#allocation3], 1
    %s325 = scalar_lea.sflag [#allocation3], 1
    %326 = vsyncpa %s325, 1
    %327 = vsyncpa [#allocation6], 1
    %328 = vsyncpa [#allocation4], 1
    %s329 = scalar_lea.sflag [#allocation4], 1
    %330 = vsyncpa %s329, 1

// kernel: tpu_custom_call.1
$region0: #{tpu_custom_call.1}
  #allocation0 [shape = 'u32[]', space=smem, size = 0x4, offset = 0x4, fixed_abs, tag = 'smem constant byte address 0x4 - core index']
  #allocation1 [shape = 'u32[144,128]{1,0:T(1,128)}', space=vmem, size = 0x12000, scoped, tag = 'internal scratch']
  %s0 = inlined_call_operand.hbm [shape: f32[16,64], index: 0, kind: input, shape index: {}]
  %s1 = inlined_call_operand.hbm [shape: f32[64,128], index: 1, kind: input, shape index: {}]
  %s2 = inlined_call_operand.vmem [shape: f32[1,128], index: 2, kind: input, shape index: {}]
  %s3 = inlined_call_operand.hbm [shape: f32[16,128], index: 3, kind: output, shape index: {}]
  %s4 = sld [smem:[#allocation0]]
  $region53: #{tpu_custom_call.1} parent=0
    _
  %s6 = ssub.s32 1, %s4
  %s7 = scalar_select 0, %s6, %s4
  $region1: #{tpu_custom_call.1} parent=0
    #allocation2 [shape = 'u8[8192]{0}', space=vmem, size = 0x2000, scoped, tag = 'input window, operand 0']
    #allocation3 [shape = 's32[2]{0}', space=sflag, size = 0x8, scoped, tag = 'scoped memory for tpu_custom_call.1']
    #allocation4 [shape = 's32[2]{0}', space=sflag, size = 0x8, scoped, tag = 'scoped memory for tpu_custom_call.1']
    #allocation5 [shape = 'u8[32768]{0}', space=vmem, size = 0x8000, scoped, tag = 'input window, operand 1, single buffered']
    #allocation6 [shape = 's32[1]{0}', space=sflag, size = 0x4, scoped, tag = 'scoped memory for tpu_custom_call.1']
    #allocation7 [shape = 'u8[8192]{0}', space=vmem, size = 0x2000, scoped, tag = 'output window, operand 0']
    %8 = vsyncpa [#allocation3], 0
    %s9 = scalar_lea.sflag [#allocation3], 1
    %10 = vsyncpa %s9, 0
    %11 = vsyncpa [#allocation6], 0
    %12 = vsyncpa [#allocation4], 0
    %s13 = scalar_lea.sflag [#allocation4], 1
    %14 = vsyncpa %s13, 0
    loop: start=0, step=1, limit=4
    $region2: #{tpu_custom_call.1} parent=1 // loop_pre_header
      _
    $region3: #{tpu_custom_call.1} parent=1 // loop_header
      %s16 = sphi 0, %s20
      %p17 = scmp.ge.s32.totalorder %s16, 4
      %s26 = sphi 0, %s28
      %s29 = sphi 0, %s26
      %s30 = sphi 0, %s29
      %s46 = sphi 0, %s30
      %s50 = sphi 0, %s50
      %s52 = sphi 0, %s50
      %s53 = sphi 0, %s52
      %s67 = sphi 0, %s53
      %s71 = sphi 0, %s71
      %s73 = sphi 0, %s71
      %s74 = sphi 0, %s73
      %s88 = sphi 0, %s74
      %s94 = sphi 0, %s96
      %s97 = sphi 0, %s94
      %s98 = sphi 0, %s97
      %s114 = sphi 0, %s98
    $region4: #{tpu_custom_call.1} parent=1 // loop_header_branch
      %19 = sbr.rel (%p17) target = $region8
    $region5: #{tpu_custom_call.1} parent=1 // loop_body
      %s21 = ssub.s32 %s16, 1
      %s22 = ssub.s32 %s16, 2
      %s23 = sadd.s32 %s16, 1
      %s24 = ssub.s32 %s16, %s23
      %p25 = scmp.eq.s32.totalorder %s24, 0
      %s27 = sadd.s32 %s26, 1
      %s28 = scalar_select %p25, %s26, %s27
      %p31 = pneg %p25
      %p32 = scmp.eq.s32.totalorder %s16, 1
      %p33 = por %p31, %p32
      %p34 = scmp.ne.s32.totalorder %s26, %s29
      %p35 = scmp.eq.s32.totalorder %s16, 0
      %p36 = por %p34, %p35
      %p37 = scmp.ne.s32.totalorder %s26, %s29
      %p38 = scmp.eq.s32.totalorder %s21, 1
      %p39 = por %p37, %p38
      %p40 = scmp.ne.s32.totalorder %s29, %s30
      %p41 = scmp.eq.s32.totalorder %s21, 0
      %p42 = por %p40, %p41
      %p43 = scmp.ne.s32.totalorder %s29, %s30
      %p44 = scmp.eq.s32.totalorder %s22, 1
      %p45 = por %p43, %p44
      %p47 = scmp.ne.s32.totalorder %s30, %s46
      %p48 = scmp.eq.s32.totalorder %s22, 0
      %p49 = por %p47, %p48
      %s51 = sadd.s32 %s50, 1
      %p54 = scmp.eq.s32.totalorder %s16, 1
      %p55 = scmp.ne.s32.totalorder %s50, %s52
      %p56 = scmp.eq.s32.totalorder %s16, 0
      %p57 = por %p55, %p56
      %p58 = scmp.ne.s32.totalorder %s50, %s52
      %p59 = scmp.eq.s32.totalorder %s21, 1
      %p60 = por %p58, %p59
      %p61 = scmp.ne.s32.totalorder %s52, %s53
      %p62 = scmp.eq.s32.totalorder %s21, 0
      %p63 = por %p61, %p62
      %p64 = scmp.ne.s32.totalorder %s52, %s53
      %p65 = scmp.eq.s32.totalorder %s22, 1
      %p66 = por %p64, %p65
      %p68 = scmp.ne.s32.totalorder %s53, %s67
      %p69 = scmp.eq.s32.totalorder %s22, 0
      %p70 = por %p68, %p69
      %s72 = sadd.s32 %s71, 1
      %p75 = scmp.eq.s32.totalorder %s16, 1
      %p76 = scmp.ne.s32.totalorder %s71, %s73
      %p77 = scmp.eq.s32.totalorder %s16, 0
      %p78 = por %p76, %p77
      %p79 = scmp.ne.s32.totalorder %s71, %s73
      %p80 = scmp.eq.s32.totalorder %s21, 1
      %p81 = por %p79, %p80
      %p82 = scmp.ne.s32.totalorder %s73, %s74
      %p83 = scmp.eq.s32.totalorder %s21, 0
      %p84 = por %p82, %p83
      %p85 = scmp.ne.s32.totalorder %s73, %s74
      %p86 = scmp.eq.s32.totalorder %s22, 1
      %p87 = por %p85, %p86
      %p89 = scmp.ne.s32.totalorder %s74, %s88
      %p90 = scmp.eq.s32.totalorder %s22, 0
      %p91 = por %p89, %p90
      %s92 = ssub.s32 %s16, %s23
      %p93 = scmp.eq.s32.totalorder %s92, 0
      %s95 = sadd.s32 %s94, 1
      %s96 = scalar_select %p93, %s94, %s95
      %p99 = pneg %p93
      %p100 = scmp.eq.s32.totalorder %s16, 1
      %p101 = por %p99, %p100
      %p102 = scmp.ne.s32.totalorder %s94, %s97
      %p103 = scmp.eq.s32.totalorder %s16, 0
      %p104 = por %p102, %p103
      %p105 = scmp.ne.s32.totalorder %s94, %s97
      %p106 = scmp.eq.s32.totalorder %s21, 1
      %p107 = por %p105, %p106
      %p108 = scmp.ne.s32.totalorder %s97, %s98
      %p109 = scmp.eq.s32.totalorder %s21, 0
      %p110 = por %p108, %p109
      %p111 = scmp.ne.s32.totalorder %s97, %s98
      %p112 = scmp.eq.s32.totalorder %s22, 1
      %p113 = por %p111, %p112
      %p115 = scmp.ne.s32.totalorder %s98, %s114
      %p116 = scmp.eq.s32.totalorder %s22, 0
      %p117 = por %p115, %p116
      %p118 = scmp.le.s32.totalorder 1, %s16
      %p119 = scmp.lt.s32.totalorder %s16, 3
      %p120 = pnand %p118, %p119
      %p121 = pneg %p120
      // Predicated region
      $region9: #{tpu_custom_call.1} parent=5 // pred_check
        _
      $region10: #{tpu_custom_call.1} parent=5 // pred_check_branch
        %123 = sbr.rel (%p120) target = $region12
      $region11: #{tpu_custom_call.1} parent=5 // pred_region
        %s124 = ssub.s32 %s16, 1
        // Predicated region
        $region13: #{tpu_custom_call.1} parent=11 // pred_check
          %p125 = pneg %p63
        $region14: #{tpu_custom_call.1} parent=11 // pred_check_branch
          %127 = sbr.rel (%p125) target = $region16
        $region15: #{tpu_custom_call.1} parent=11 // pred_region
          %s129 = ssub.s32 1024, 1024
          %130 = vsyncadd [#allocation6], %s129
          %s131 = sshll.u32 [#allocation5], 4
          %s132 = int_to_ptr.vmem [resolvable:$true] %s131
          %137 = dma.hbm_to_vmem [thread:$0]  %s1, 1024, %s132, [#allocation6], 128, 128, 8
        $region16: #{tpu_custom_call.1} parent=11 // pred_fallthru
          _
        // Predicated region
        $region17: #{tpu_custom_call.1} parent=11 // pred_check
          %p138 = pneg %p84
        $region18: #{tpu_custom_call.1} parent=11 // pred_check_branch
          %140 = sbr.rel (%p138) target = $region20
        $region19: #{tpu_custom_call.1} parent=11 // pred_region
          _
        $region20: #{tpu_custom_call.1} parent=11 // pred_fallthru
          _
      $region12: #{tpu_custom_call.1} parent=5 // pred_fallthru
        _
      %p141 = scmp.lt.s32.totalorder %s16, 2
      // Predicated region
      $region21: #{tpu_custom_call.1} parent=5 // pred_check
        %p142 = pneg %p141
      $region22: #{tpu_custom_call.1} parent=5 // pred_check_branch
        %144 = sbr.rel (%p142) target = $region24
      $region23: #{tpu_custom_call.1} parent=5 // pred_region
        // Predicated region
        $region25: #{tpu_custom_call.1} parent=23 // pred_check
          %p145 = pneg %p36
        $region26: #{tpu_custom_call.1} parent=23 // pred_check_branch
          %147 = sbr.rel (%p145) target = $region28
        $region27: #{tpu_custom_call.1} parent=23 // pred_region
          %s148 = sand.u32 %s26, 1
          %s149 = scalar_lea.sflag [#allocation3], %s148
          %s150 = sand.u32 %s26, 1
          %s151 = smul.addr %s150, 8
          %s152 = scalar_lea.vmem [#allocation2], %s151
          %s154 = ssub.s32 128, 128
          %155 = vsyncadd %s149, %s154
          %s156 = smul.addr %s16, 128
          %s157 = scalar_lea.hbm %s0, %s156
          %s159 = sshll.u32 %s152, 4
          %s160 = int_to_ptr.vmem [resolvable:$true] %s159
          %162 = dma.hbm_to_vmem [thread:$0]  %s157, 128, %s160, %s149
        $region28: #{tpu_custom_call.1} parent=23 // pred_fallthru
          _
      $region24: #{tpu_custom_call.1} parent=5 // pred_fallthru
        _
      %p163 = scmp.le.s32.totalorder 1, %s16
      %p164 = scmp.lt.s32.totalorder %s16, 3
      %p165 = pnand %p163, %p164
      %p166 = pneg %p165
      // Predicated region
      $region29: #{tpu_custom_call.1} parent=5 // pred_check
        _
      $region30: #{tpu_custom_call.1} parent=5 // pred_check_branch
        %168 = sbr.rel (%p165) target = $region32
      $region31: #{tpu_custom_call.1} parent=5 // pred_region
        %s169 = ssub.s32 %s16, 1
        %s170 = sand.u32 %s29, 1
        %s171 = scalar_lea.sflag [#allocation3], %s170
        %s172 = sand.u32 %s29, 1
        %s173 = smul.addr %s172, 8
        %s174 = scalar_lea.vmem [#allocation2], %s173
        // Predicated region
        $region33: #{tpu_custom_call.1} parent=31 // pred_check
          %p175 = pneg %p42
        $region34: #{tpu_custom_call.1} parent=31 // pred_check_branch
          %177 = sbr.rel (%p175) target = $region36
        $region35: #{tpu_custom_call.1} parent=31 // pred_region
          %178 = dma.done %s171, 128
        $region36: #{tpu_custom_call.1} parent=31 // pred_fallthru
          _
        // Predicated region
        $region37: #{tpu_custom_call.1} parent=31 // pred_check
          %p179 = pneg %p63
        $region38: #{tpu_custom_call.1} parent=31 // pred_check_branch
          %181 = sbr.rel (%p179) target = $region40
        $region39: #{tpu_custom_call.1} parent=31 // pred_region
          %182 = dma.done [#allocation6], 1024
        $region40: #{tpu_custom_call.1} parent=31 // pred_fallthru
          _
        %s183 = sand.u32 %s29, 1
        %s184 = scalar_lea.sflag [#allocation3], %s183
        %s185 = sand.u32 %s29, 1
        %s186 = smul.addr %s185, 8
        %s187 = scalar_lea.vmem [#allocation2], %s186
        %p188 = pneg %p42
        %p189 = pneg %p39
        %p190 = pneg %p63
        %p191 = pneg %p60
        %p192 = pneg %p84
        %p193 = pneg %p81
        %p194 = pneg %p110
        %p195 = pneg %p107
        %s196 = sand.u32 %s97, 1
        %s197 = scalar_lea.sflag [#allocation4], %s196
        %s198 = sand.u32 %s97, 1
        %s199 = smul.addr %s198, 8
        %s200 = scalar_lea.vmem [#allocation7], %s199
        %v201 = vld [vmem:[%s174] sm:$0xff]
        %v202 = vld [vmem:[#allocation5] sm:$0xff]
        %v203 = vld [vmem:[#allocation5 + $0x8] sm:$0xff]
        %v204 = vld [vmem:[#allocation5 + $0x10] sm:$0xff]
        %v205 = vld [vmem:[#allocation5 + $0x18] sm:$0xff]
        %v206 = vld [vmem:[#allocation5 + $0x20] sm:$0xff]
        %v207 = vld [vmem:[#allocation5 + $0x28] sm:$0xff]
        %v208 = vld [vmem:[#allocation5 + $0x30] sm:$0xff]
        %v209 = vld [vmem:[#allocation5 + $0x38] sm:$0xff]
        %v210 = vld [vmem:[%s2] sm:$0x1]
        %v212 = vlaneseq
        %v213 = vshrl.u32 %v212, 7
        %v214 = vsub.s32 0, %v213
        %v215 = vrot.slane %v210, %v214
        %vm217 = vcmask 523264
        %v219 = vsel %vm217, %v201, 0
        %221 = vmatprep.subr.mxu0 0.0
        %222 = vmatpush1.msra.mxu0 %v202
        %223 = vmatprep.subr.mxu0 0.0
        %224 = vmatpush1.msra.mxu0 %v203
        %225 = vmatprep.subr.mxu0 0.0
        %226 = vmatpush1.msra.mxu0 %v204
        %227 = vmatprep.subr.mxu0 0.0
        %228 = vmatpush1.msra.mxu0 %v205
        %229 = vmatprep.subr.mxu0 0.0
        %230 = vmatpush1.msra.mxu0 %v206
        %231 = vmatprep.subr.mxu0 0.0
        %232 = vmatpush1.msra.mxu0 %v207
        %233 = vmatprep.subr.mxu0 0.0
        %234 = vmatpush1.msra.mxu0 %v208
        %235 = vmatprep.subr.mxu0 0.0
        %236 = vmatpush1.msra.mxu0 %v209
        %237 = vmatprep.subr.mxu0 0.0
        %238 = vmatpush1.msra.mxu0 0.0
        %239 = vmatprep.subr.mxu0 0.0
        %240 = vmatpush1.msra.mxu0 0.0
        %241 = vmatprep.subr.mxu0 0.0
        %242 = vmatpush1.msra.mxu0 0.0
        %243 = vmatprep.subr.mxu0 0.0
        %244 = vmatpush1.msra.mxu0 0.0
        %245 = vmatprep.subr.mxu0 0.0
        %246 = vmatpush1.msra.mxu0 0.0
        %247 = vmatprep.subr.mxu0 0.0
        %248 = vmatpush1.msra.mxu0 0.0
        %249 = vmatprep.subr.mxu0 0.0
        %250 = vmatpush1.msra.mxu0 0.0
        %251 = vmatprep.subr.mxu0 0.0
        %252 = vmatpush1.msra.mxu0 0.0
        %253 = vmatprep.subr.mxu0 0.0
        %254 = vmatpush1.msra.mxu0 0.0
        %255 = vmatprep.subr.mxu0 0.0
        %256 = vmatpush1.msra.mxu0 0.0
        %257 = vmatprep.subr.mxu0 0.0
        %258 = vmatpush1.msra.mxu0 0.0
        %259 = vmatprep.subr.mxu0 0.0
        %260 = vmatpush1.msra.mxu0 0.0
        %261 = vmatprep.subr.mxu0 0.0
        %262 = vmatpush1.msra.mxu0 0.0
        %263 = vmatprep.subr.mxu0 0.0
        %264 = vmatpush1.msra.mxu0 0.0
        %265 = vmatprep.subr.mxu0 0.0
        %266 = vmatpush1.msra.mxu0 0.0
        %267 = vmatprep.subr.mxu0 0.0
        %268 = vmatpush1.msra.mxu0 0.0
        %269 = vmatprep.subr.mxu0 0.0
        %270 = vmatpush1.msra.mxu0 0.0
        %271 = vmatprep.subr.mxu0 0.0
        %272 = vmatpush1.msra.mxu0 0.0
        %273 = vmatprep.subr.mxu0 0.0
        %274 = vmatpush1.msra.mxu0 0.0
        %275 = vmatprep.subr.mxu0 0.0
        %276 = vmatpush1.msra.mxu0 0.0
        %277 = vmatprep.subr.mxu0 0.0
        %278 = vmatpush1.msra.mxu0 0.0
        %279 = vmatprep.subr.mxu0 0.0
        %280 = vmatpush1.msra.mxu0 0.0
        %281 = vmatprep.subr.mxu0 0.0
        %282 = vmatpush1.msra.mxu0 0.0
        %283 = vmatprep.subr.mxu0 0.0
        %284 = vmatpush1.msra.mxu0 0.0
        %285 = vmatprep.mubr.f32.mxu0 0.0
        %286 = vmatmul.mubr.f32.gmra.mrb[0].mxu0 %v219
        %v287 = vpop.f32.mrb[0].mxu0
        %v288 = vadd.f32 %v215, %v287
        %v289 = vpop.f32.mrb[0].mxu0
        %290 = vdwg.mxu0
        %291 = vst [vmem:[%s200] sm:$0xff] %v288
        %s292 = sand.u32 %s97, 1
        %s293 = scalar_lea.sflag [#allocation4], %s292
        %s294 = sand.u32 %s97, 1
        %s295 = smul.addr %s294, 8
        %s296 = scalar_lea.vmem [#allocation7], %s295
        // Predicated region
        $region41: #{tpu_custom_call.1} parent=31 // pred_check
          %p297 = pneg %p107
        $region42: #{tpu_custom_call.1} parent=31 // pred_check_branch
          %299 = sbr.rel (%p297) target = $region44
        $region43: #{tpu_custom_call.1} parent=31 // pred_region
          %s301 = ssub.s32 128, 128
          %302 = vsyncadd %s293, %s301
          %s303 = smul.addr %s21, 128
          %s304 = scalar_lea.hbm %s3, %s303
          %s306 = sshll.u32 %s296, 4
          %s307 = int_to_ptr.vmem [resolvable:$true] %s306
          %309 = dma.vmem_to_hbm [thread:$0]  %s307, 128, %s304, %s293
        $region44: #{tpu_custom_call.1} parent=31 // pred_fallthru
          _
      $region32: #{tpu_custom_call.1} parent=5 // pred_fallthru
        _
      %p310 = scmp.le.s32.totalorder 2, %s16
      // Predicated region
      $region45: #{tpu_custom_call.1} parent=5 // pred_check
        %p311 = pneg %p310
      $region46: #{tpu_custom_call.1} parent=5 // pred_check_branch
        %313 = sbr.rel (%p311) target = $region48
      $region47: #{tpu_custom_call.1} parent=5 // pred_region
        %s314 = ssub.s32 %s16, 2
        // Predicated region
        $region49: #{tpu_custom_call.1} parent=47 // pred_check
          %p315 = pneg %p113
        $region50: #{tpu_custom_call.1} parent=47 // pred_check_branch
          %317 = sbr.rel (%p315) target = $region52
        $region51: #{tpu_custom_call.1} parent=47 // pred_region
          %s318 = sand.u32 %s98, 1
          %s319 = scalar_lea.sflag [#allocation4], %s318
          %s320 = sand.u32 %s98, 1
          %s321 = smul.addr %s320, 8
          %s322 = scalar_lea.vmem [#allocation7], %s321
          %323 = dma.done %s319, 128
        $region52: #{tpu_custom_call.1} parent=47 // pred_fallthru
          _
      $region48: #{tpu_custom_call.1} parent=5 // pred_fallthru
        _
    $region6: #{tpu_custom_call.1} parent=1 // loop_footer
      %s20 = sadd.s32 1, %s16
    $region7: #{tpu_custom_call.1} parent=1 // loop_footer_branch
      %15 = sbr.rel target = $region3
    $region8: #{tpu_custom_call.1} parent=1 // loop_exit
      _
    %324 = vsyncpa [#allocation3], 1
    %s325 = scalar_lea.sflag [#allocation3], 1
    %326 = vsyncpa %s325, 1
    %327 = vsyncpa [#allocation6], 1
    %328 = vsyncpa [#allocation4], 1
    %s329 = scalar_lea.sflag [#allocation4], 1
    %330 = vsyncpa %s329, 1

</llo_original>
